<compile_context>
chip_gen: v7x
topology: tpu7x:2x2x1
jax: 0.10.0
libtpu: 0.0.40
codegen_flags: <defaults>
</compile_context>

<pallas_src>
import jax
import jax.numpy as jnp
from jax.experimental import pallas as pl
from jax.experimental.pallas import tpu as pltpu

MEAN = 0
CONFIDENCE = 1

LANE = 128            # TPU lane width (last-dim tile)
MAX_BLOCK_ROWS = 1024 # 1024 x 128 f32 = 512 KiB/block/buffer; x2 buffers x
                      # (in+out) ~ 2 MiB VMEM — safe under v5e's 16 MiB scoped
                      # default and far under v7x's 64 MiB physical VMEM.


# ----------------------------------------------------------------------------
# Kernel: identity forward over a sublane/lane-dense slab of truth values.
# (Placeholder fusion point — future TV math goes here.)
# ----------------------------------------------------------------------------
def _tv_forward_kernel(tv_ref, out_ref):
    out_ref[...] = tv_ref[...]


def _packed_forward(packed):
    """packed: f32[R, 128] lane-dense slab; R is a multiple of block_rows."""
    R = packed.shape[0]
    block_rows = R if R <= MAX_BLOCK_ROWS else MAX_BLOCK_ROWS
    assert R % block_rows == 0
    grid = (R // block_rows,)
    return pl.pallas_call(
        _tv_forward_kernel,
        out_shape=jax.ShapeDtypeStruct(packed.shape, packed.dtype),
        grid=grid,
        in_specs=[pl.BlockSpec((block_rows, LANE), lambda i: (i, 0))],
        out_specs=pl.BlockSpec((block_rows, LANE), lambda i: (i, 0)),
        compiler_params=pltpu.CompilerParams(
            dimension_semantics=("parallel",)),
    )(packed)


def _batched_inheritance_forward(tvs):
    """Forward N truth values through ONE lane-dense Pallas kernel.

    Args:
      tvs: f32[N, 2] — per-module [mean, confidence].
    Returns:
      f32[N, 2] — identical values (identity forward), round-tripped through
      a sublane/lane-dense (R, 128) slab kernel.
    """
    N = tvs.shape[0]
    flat = tvs.reshape(-1)                      # (2N,), mean/conf interleaved
    L = flat.shape[0]
    # Pad so the packed slab is (rows, 128) with rows an exact multiple of the
    # block-row count -> unmasked full-vreg stores and an evenly divided grid.
    rows = pl.cdiv(L, LANE)
    if rows > MAX_BLOCK_ROWS:
        rows = pl.cdiv(rows, MAX_BLOCK_ROWS) * MAX_BLOCK_ROWS
    padded_len = rows * LANE
    flat = jnp.pad(flat, (0, padded_len - L))
    packed = flat.reshape(rows, LANE)
    out = _packed_forward(packed)
    return out.reshape(-1)[:L].reshape(N, 2)


batched_inheritance_forward = jax.jit(_batched_inheritance_forward)


# ----------------------------------------------------------------------------
# Module stand-in
# ----------------------------------------------------------------------------
class InheritanceModuleJAX:
    """JAX stand-in for InheritanceModule (numeric state + forward() only)."""

    def __init__(self, init_tv):
        init_tv = jnp.asarray(init_tv, dtype=jnp.float32)
        assert init_tv.shape == (2,), "TTruthValue must have exactly 2 elements"
        self.tv = init_tv  # [mean, confidence]

    def forward(self):
        # Hot path: pure 8-byte pass-through; launching a kernel here would be
        # 100% dispatch/DMA overhead, so return the stored TV directly.
        return self.tv

    @property
    def mean(self):
        return self.tv[MEAN]

    @property
    def confidence(self):
        return self.tv[CONFIDENCE]


if __name__ == "__main__":
    key = jax.random.PRNGKey(0)

    # Deterministic small batch of N truth values in [0, 1): (mean, confidence)
    N = 8
    init_tvs = jax.random.uniform(key, (N, 2), dtype=jnp.float32)

    modules = [InheritanceModuleJAX(init_tvs[i]) for i in range(N)]

    # --- per-module forward(): identical to self.tv, no kernel launched ---
    for m in modules:
        out = m.forward()
        assert out.shape == (2,)
        assert jnp.array_equal(out, m.tv)

    # --- batched forward through ONE lane-dense Pallas kernel ---
    stacked = jnp.stack([m.tv for m in modules], axis=0)        # (N, 2)
    batched_out = batched_inheritance_forward(stacked)
    batched_out = jax.block_until_ready(batched_out)

    assert batched_out.shape == (N, 2)
    assert jnp.array_equal(batched_out, stacked), (batched_out, stacked)
    # per-module values round-trip through the kernel unchanged
    for i, m in enumerate(modules):
        assert jnp.array_equal(batched_out[i], m.tv)

    print("KERNEL_OK")
</pallas_src>

<mosaic_0001>
module attributes {stable_mosaic.version = 11 : i64} {
  func.func @_tv_forward_kernel(%arg0: i32, %arg1: memref<1x128xf32, #tpu.memory_space<vmem>>, %arg2: memref<1x128xf32, #tpu.memory_space<vmem>>) attributes {dimension_semantics = [#tpu.dimension_semantics<parallel>], iteration_bounds = array<i64: 1>, scalar_prefetch = 0 : i64, scratch_operands = 0 : i64, tpu.core_type = #tpu.core_type<tc>, window_params = [{transform_indices = @transform_0, window_bounds = array<i64: 1, 128>}, {transform_indices = @transform_1, window_bounds = array<i64: 1, 128>}]} {
    %c0 = arith.constant 0 : index
    %c0_0 = arith.constant 0 : index
    %0 = vector.load %arg1[%c0, %c0_0] : memref<1x128xf32, #tpu.memory_space<vmem>>, vector<1x128xf32>
    %c0_1 = arith.constant 0 : index
    %c0_2 = arith.constant 0 : index
    %1 = vector.load %arg2[%c0_1, %c0_2] : memref<1x128xf32, #tpu.memory_space<vmem>>, vector<1x128xf32>
    tpu.vector_store %arg2[%c0_1, %c0_2], %0 {strides = array<i32>} : memref<1x128xf32, #tpu.memory_space<vmem>>, vector<1x128xf32>,
    return
  }
  func.func @transform_0(%arg0: i32) -> (i32, i32) {
    %c0_i32 = arith.constant 0 : i32
    %c0_i32_0 = arith.constant 0 : i32
    return %arg0, %c0_i32 : i32, i32
  }
  func.func @transform_1(%arg0: i32) -> (i32, i32) {
    %c0_i32 = arith.constant 0 : i32
    %c0_i32_0 = arith.constant 0 : i32
    return %arg0, %c0_i32 : i32, i32
  }
}

</mosaic_0001>

<llo_original>
// kernel: _batched_inheritance_forward.1
$region0: #{_batched_inheritance_forward.1}
  #allocation0 [shape = 'u32[]', space=smem, size = 0x4, offset = 0x4, fixed_abs, tag = 'smem constant byte address 0x4 - core index']
  #allocation1 [shape = 'u32[144,128]{1,0:T(1,128)}', space=vmem, size = 0x12000, scoped, tag = 'internal scratch']
  %s0 = inlined_call_operand.vmem [shape: f32[1,128], index: 0, kind: input, shape index: {}]
  %s1 = inlined_call_operand.vmem [shape: f32[1,128], index: 1, kind: output, shape index: {}]
  %s2 = sld [smem:[#allocation0]]
  $region14: #{_batched_inheritance_forward.1} parent=0
    _
  %s4 = ssub.s32 1, %s2
  %s5 = scalar_select 0, %s4, %s2
  // Predicated region
  $region2: #{_batched_inheritance_forward.1} parent=0 // pred_check
    _
  $region3: #{_batched_inheritance_forward.1} parent=0 // pred_check_branch
    %7 = sbr.rel (0) target = $region5
  $region4: #{_batched_inheritance_forward.1} parent=0 // pred_region
    _
  $region5: #{_batched_inheritance_forward.1} parent=0 // pred_fallthru
    _
  %v8 = vld [vmem:[%s0] sm:$0x1]
  %9 = vst [vmem:[%s1] sm:$0x1] %v8
  // Predicated region
  $region6: #{_batched_inheritance_forward.1} parent=0 // pred_check
    _
  $region7: #{_batched_inheritance_forward.1} parent=0 // pred_check_branch
    %11 = sbr.rel (0) target = $region9
  $region8: #{_batched_inheritance_forward.1} parent=0 // pred_region
    _
  $region9: #{_batched_inheritance_forward.1} parent=0 // pred_fallthru
    _
  // Predicated region
  $region10: #{_batched_inheritance_forward.1} parent=0 // pred_check
    _
  $region11: #{_batched_inheritance_forward.1} parent=0 // pred_check_branch
    %13 = sbr.rel (0) target = $region13
  $region12: #{_batched_inheritance_forward.1} parent=0 // pred_region
    _
  $region13: #{_batched_inheritance_forward.1} parent=0 // pred_fallthru
    _

</llo_original>
